<compile_context>
chip_gen: v5e
topology: v5e:2x2
jax: 0.10.0
libtpu: 0.0.40
codegen_flags: <defaults>
</compile_context>

<pallas_src>
import jax
import jax.numpy as jnp
from jax.experimental import pallas as pl
from jax.experimental.pallas import tpu as pltpu


# ----------------------------- Pallas kernel --------------------------------
def _model_trans_kernel(a_ref,                                  # (N*TB, D) n-major slab
                        wk1_ref, bk1_ref, wk2_ref, bk2_ref,     # mvit_knet
                        wq1_ref, bq1_ref, wq2_ref, bq2_ref,     # mvit_qnet (wq1 as (N, D, H))
                        o_ref):                                 # (TB, D)
    tb = o_ref.shape[0]
    n_bb = wq1_ref.shape[0]
    d = a_ref.shape[-1]
    inv_sqrt_d = 1.0 / float(d) ** 0.5
    inv_n = 1.0 / float(n_bb)

    a2d = a_ref[...]                                            # (N*TB, D)
    a_n = [a2d[n * tb:(n + 1) * tb, :] for n in range(n_bb)]    # tile-aligned (TB, D) views

    # ----- mvit_knet: ONE matmul pair over all backbone slots and batch rows -----
    h = jnp.maximum(
        jnp.dot(a2d, wk1_ref[...], preferred_element_type=jnp.float32) + bk1_ref[...], 0.0)
    key2d = jnp.dot(h, wk2_ref[...], preferred_element_type=jnp.float32) + bk2_ref[...]

    # ----- mvit_qnet on the flattened features, without materializing them -----
    #   flat @ Wq1  ==  sum_n a[:, n, :] @ Wq1[n]      (Wq1 reshaped n-major)
    hq = jnp.dot(a_n[0], wq1_ref[0], preferred_element_type=jnp.float32)
    for n in range(1, n_bb):
        hq = hq + jnp.dot(a_n[n], wq1_ref[n], preferred_element_type=jnp.float32)
    hq = jnp.maximum(hq + bq1_ref[...], 0.0)
    qry = jnp.dot(hq, wq2_ref[...], preferred_element_type=jnp.float32) + bq2_ref[...]  # (TB, D)

    # ----- beta[b, n] = <key[b,n,:], qry[b,:]> / sqrt(D): one (N*TB, 1) reduction -----
    qry_rep = jnp.concatenate([qry] * n_bb, axis=0)             # (N*TB, D), same n-major order
    beta2d = jnp.sum(key2d * qry_rep, axis=-1, keepdims=True) * inv_sqrt_d  # (N*TB, 1)

    # ----- softmax over n (per batch row) via static per-n (TB, 1) slices -----
    beta_n = [beta2d[n * tb:(n + 1) * tb, :] for n in range(n_bb)]
    m = beta_n[0]
    for bt in beta_n[1:]:
        m = jnp.maximum(m, bt)
    e_n = [jnp.exp(bt - m) for bt in beta_n]
    denom = e_n[0]
    for e in e_n[1:]:
        denom = denom + e
    inv_denom = pl.reciprocal(denom, approx=True)               # EUP slot (essentially free)

    # ----- out = mean_n( score[b, n] * a[b, n, :] ) -----
    acc = a_n[0] * (e_n[0] * inv_denom)
    for n in range(1, n_bb):
        acc = acc + a_n[n] * (e_n[n] * inv_denom)
    o_ref[...] = (acc * inv_n).astype(o_ref.dtype)


def _resident(shape):
    """BlockSpec for a weight that is fully resident (constant block index)."""
    nd = len(shape)
    return pl.BlockSpec(shape, lambda b, _nd=nd: (0,) * _nd)


def model_trans_pallas(stacked, params, max_blocks=1):
    """stacked: [Btot, N, D] float32  ->  [Btot, D] float32 (input_b == input_a).

    max_blocks=2 is only worthwhile on v7x (2 TensorCores) and only once every grid
    step gets >= 8 batch rows; on single-TC chips (v5e/v6e) keep max_blocks=1.
    """
    btot, n_bb, d = stacked.shape
    hidden = params["wk1"].shape[1]

    # Batch rows per grid step must be a full sublane group (multiple of 8).
    bpad8 = -(-btot // 8) * 8
    num_blocks = max(1, min(max_blocks, bpad8 // 8))
    tb = -(-bpad8 // num_blocks)
    tb = -(-tb // 8) * 8
    bpad = tb * num_blocks

    if bpad != btot:
        stacked = jnp.pad(stacked, ((0, bpad - btot), (0, 0), (0, 0)))

    # Block-major, n-major 2D slab:
    #   row  blk*(N*tb) + n*tb + r   ==   stacked[blk*tb + r, n, :]
    a2d = (stacked.reshape(num_blocks, tb, n_bb, d)
                  .transpose(0, 2, 1, 3)
                  .reshape(num_blocks * n_bb * tb, d))

    # n-major reshape of the flattened-input weight: wq1_r[n, dd, :] == wq1[n*D + dd, :]
    wq1_r = params["wq1"].reshape(n_bb, d, hidden)              # (N, D, H)

    grid_spec = pltpu.PrefetchScalarGridSpec(
        num_scalar_prefetch=0,
        grid=(num_blocks,),
        in_specs=[
            pl.BlockSpec((n_bb * tb, d), lambda b: (b, 0)),     # n-major input slab
            _resident((d, hidden)), _resident((1, hidden)),     # knet layer 1
            _resident((hidden, d)), _resident((1, d)),          # knet layer 2
            _resident((n_bb, d, hidden)), _resident((1, hidden)),  # qnet layer 1
            _resident((hidden, d)), _resident((1, d)),          # qnet layer 2
        ],
        out_specs=pl.BlockSpec((tb, d), lambda b: (b, 0)),
    )

    out = pl.pallas_call(
        _model_trans_kernel,
        out_shape=jax.ShapeDtypeStruct((bpad, d), jnp.float32),
        grid_spec=grid_spec,
        compiler_params=pltpu.CompilerParams(dimension_semantics=("parallel",)),
    )(a2d,
      params["wk1"], params["bk1"], params["wk2"], params["bk2"],
      wq1_r, params["bq1"], params["wq2"], params["bq2"])
    return out[:btot]


# ----------------------------- parameter setup ------------------------------
def xavier_uniform(key, fan_in, fan_out):
    limit = jnp.sqrt(6.0 / (fan_in + fan_out))
    return jax.random.uniform(key, (fan_in, fan_out), jnp.float32, -limit, limit)


def init_params(key, bb_num, fts_dim, hidden):
    d = 9 * fts_dim
    ks = jax.random.split(key, 8)
    return {
        # mvit_knet: Linear(D, H) -> ReLU -> Linear(H, D)
        "wk1": xavier_uniform(ks[0], d, hidden),
        "bk1": 0.01 * jax.random.normal(ks[1], (1, hidden), jnp.float32),
        "wk2": xavier_uniform(ks[2], hidden, d),
        "bk2": 0.01 * jax.random.normal(ks[3], (1, d), jnp.float32),
        # mvit_qnet: Linear(D * bb_num, H) -> ReLU -> Linear(H, D)
        "wq1": xavier_uniform(ks[4], d * bb_num, hidden),
        "bq1": 0.01 * jax.random.normal(ks[5], (1, hidden), jnp.float32),
        "wq2": xavier_uniform(ks[6], hidden, d),
        "bq2": 0.01 * jax.random.normal(ks[7], (1, d), jnp.float32),
    }


# --------------------------- full forward (glue) -----------------------------
def ocid_ur_net_forward(params, exmp_fts, sear_fts):
    """exmp_fts / sear_fts: [B, bb_num, 3, 3, fts_dim].  Returns ([B, D], [B, D])."""
    be, n_e = exmp_fts.shape[:2]
    bs, n_s = sear_fts.shape[:2]
    exmp = exmp_fts.reshape(be, n_e, -1).astype(jnp.float32)
    sear = sear_fts.reshape(bs, n_s, -1).astype(jnp.float32)
    # Both branches share all weights -> one fused pallas_call over the stacked batch.
    stacked = jnp.concatenate([exmp, sear], axis=0)             # (be+bs, N, D)
    out = model_trans_pallas(stacked, params)
    return out[:be], out[be:]


# ------------------------------ JAX reference --------------------------------
def _ref_model_trans(a, p):
    key = jnp.maximum(a @ p["wk1"] + p["bk1"][0], 0.0) @ p["wk2"] + p["bk2"][0]     # [B,N,D]
    flat = a.reshape(a.shape[0], -1)
    qry = jnp.maximum(flat @ p["wq1"] + p["bq1"][0], 0.0) @ p["wq2"] + p["bq2"][0]  # [B,D]
    beta = jnp.einsum("bnd,bd->bn", key, qry) / jnp.sqrt(jnp.float32(key.shape[-1]))
    score = jax.nn.softmax(beta, axis=1)
    return jnp.mean(a * score[..., None], axis=1)


def _ref_forward(params, exmp_fts, sear_fts):
    d0, d1 = exmp_fts.shape[:2]
    exmp = exmp_fts.reshape(d0, d1, -1).astype(jnp.float32)
    d0, d1 = sear_fts.shape[:2]
    sear = sear_fts.reshape(d0, d1, -1).astype(jnp.float32)
    return _ref_model_trans(exmp, params), _ref_model_trans(sear, params)


# ---------------------------------- main -------------------------------------
if __name__ == "__main__":
    # args: model.backbone_num=4, model.fts_dim=16 (-> mvit_in_dim=144),
    #       model.ASNet_hidden_dim=32, model.dropout_en=False, model.init=True
    B, BB_NUM, FTS_DIM, HIDDEN = 2, 4, 16, 32
    D = 9 * FTS_DIM

    root = jax.random.PRNGKey(0)
    k_param, k_exmp, k_sear = jax.random.split(root, 3)

    params = init_params(k_param, BB_NUM, FTS_DIM, HIDDEN)

    exmp_fts = jax.random.normal(k_exmp, (B, BB_NUM, 3, 3, FTS_DIM), jnp.float32)
    sear_fts = jax.random.normal(k_sear, (B, BB_NUM, 3, 3, FTS_DIM), jnp.float32)

    fwd = jax.jit(ocid_ur_net_forward)
    exmp_out, sear_out = fwd(params, exmp_fts, sear_fts)
    jax.block_until_ready((exmp_out, sear_out))

    # Correctness check against a pure-JAX reference of the same math.
    # Tolerance 2e-3: the kernel uses the EUP approximate reciprocal for the softmax
    # denominator (rel err ~2^-12); structural errors would be >> 2e-3.
    ref_exmp, ref_sear = _ref_forward(params, exmp_fts, sear_fts)
    assert exmp_out.shape == (B, D) and sear_out.shape == (B, D)
    assert jnp.allclose(exmp_out, ref_exmp, atol=2e-3, rtol=2e-3)
    assert jnp.allclose(sear_out, ref_sear, atol=2e-3, rtol=2e-3)

    print("KERNEL_OK")
</pallas_src>

<mosaic_0001>
module attributes {stable_mosaic.version = 11 : i64} {
  func.func @_model_trans_kernel(%arg0: i32, %arg1: memref<32x144xf32, #tpu.memory_space<vmem>>, %arg2: memref<144x32xf32, #tpu.memory_space<vmem>>, %arg3: memref<1x32xf32, #tpu.memory_space<vmem>>, %arg4: memref<32x144xf32, #tpu.memory_space<vmem>>, %arg5: memref<1x144xf32, #tpu.memory_space<vmem>>, %arg6: memref<4x144x32xf32, #tpu.memory_space<vmem>>, %arg7: memref<1x32xf32, #tpu.memory_space<vmem>>, %arg8: memref<32x144xf32, #tpu.memory_space<vmem>>, %arg9: memref<1x144xf32, #tpu.memory_space<vmem>>, %arg10: memref<8x144xf32, #tpu.memory_space<vmem>>) attributes {dimension_semantics = [#tpu.dimension_semantics<parallel>], iteration_bounds = array<i64: 1>, scalar_prefetch = 0 : i64, scratch_operands = 0 : i64, tpu.core_type = #tpu.core_type<tc>, window_params = [{transform_indices = @transform_0, window_bounds = array<i64: 32, 144>}, {pipeline_mode = #tpu.pipeline_mode<synchronous>, transform_indices = @transform_1, window_bounds = array<i64: 144, 32>}, {pipeline_mode = #tpu.pipeline_mode<synchronous>, transform_indices = @transform_2, window_bounds = array<i64: 1, 32>}, {pipeline_mode = #tpu.pipeline_mode<synchronous>, transform_indices = @transform_3, window_bounds = array<i64: 32, 144>}, {pipeline_mode = #tpu.pipeline_mode<synchronous>, transform_indices = @transform_4, window_bounds = array<i64: 1, 144>}, {pipeline_mode = #tpu.pipeline_mode<synchronous>, transform_indices = @transform_5, window_bounds = array<i64: 4, 144, 32>}, {pipeline_mode = #tpu.pipeline_mode<synchronous>, transform_indices = @transform_6, window_bounds = array<i64: 1, 32>}, {pipeline_mode = #tpu.pipeline_mode<synchronous>, transform_indices = @transform_7, window_bounds = array<i64: 32, 144>}, {pipeline_mode = #tpu.pipeline_mode<synchronous>, transform_indices = @transform_8, window_bounds = array<i64: 1, 144>}, {transform_indices = @transform_9, window_bounds = array<i64: 8, 144>}]} {
    %c0 = arith.constant 0 : index
    %c0_0 = arith.constant 0 : index
    %0 = vector.load %arg1[%c0, %c0_0] : memref<32x144xf32, #tpu.memory_space<vmem>>, vector<32x144xf32>
    %1 = vector.extract_strided_slice %0 {offsets = [0, 0], sizes = [8, 144], strides = [1, 1]} : vector<32x144xf32> to vector<8x144xf32>
    %2 = vector.extract_strided_slice %0 {offsets = [8, 0], sizes = [8, 144], strides = [1, 1]} : vector<32x144xf32> to vector<8x144xf32>
    %3 = vector.extract_strided_slice %0 {offsets = [16, 0], sizes = [8, 144], strides = [1, 1]} : vector<32x144xf32> to vector<8x144xf32>
    %4 = vector.extract_strided_slice %0 {offsets = [24, 0], sizes = [8, 144], strides = [1, 1]} : vector<32x144xf32> to vector<8x144xf32>
    %c0_1 = arith.constant 0 : index
    %c0_2 = arith.constant 0 : index
    %5 = vector.load %arg2[%c0_1, %c0_2] : memref<144x32xf32, #tpu.memory_space<vmem>>, vector<144x32xf32>
    %cst = arith.constant dense<0.000000e+00> : vector<32x32xf32>
    %6 = tpu.matmul %0, %5, %cst {dimension_numbers = #tpu.dot_dimension_numbers<[1], [0], [0], [1], [0, 0, 1, 1], [], []>} : vector<32x144xf32>, vector<144x32xf32>, vector<32x32xf32> -> vector<32x32xf32>
    %c0_3 = arith.constant 0 : index
    %c0_4 = arith.constant 0 : index
    %7 = vector.load %arg3[%c0_3, %c0_4] : memref<1x32xf32, #tpu.memory_space<vmem>>, vector<1x32xf32>
    %8 = vector.broadcast %7 : vector<1x32xf32> to vector<32x32xf32>
    %9 = arith.addf %6, %8 : vector<32x32xf32>
    %cst_5 = arith.constant 0.000000e+00 : f32
    %10 = vector.broadcast %cst_5 : f32 to vector<32x32xf32>
    %11 = arith.maximumf %9, %10 : vector<32x32xf32>
    %c0_6 = arith.constant 0 : index
    %c0_7 = arith.constant 0 : index
    %12 = vector.load %arg4[%c0_6, %c0_7] : memref<32x144xf32, #tpu.memory_space<vmem>>, vector<32x144xf32>
    %cst_8 = arith.constant dense<0.000000e+00> : vector<32x144xf32>
    %13 = tpu.matmul %11, %12, %cst_8 {dimension_numbers = #tpu.dot_dimension_numbers<[1], [0], [0], [1], [0, 0, 1, 1], [], []>} : vector<32x32xf32>, vector<32x144xf32>, vector<32x144xf32> -> vector<32x144xf32>
    %c0_9 = arith.constant 0 : index
    %c0_10 = arith.constant 0 : index
    %14 = vector.load %arg5[%c0_9, %c0_10] : memref<1x144xf32, #tpu.memory_space<vmem>>, vector<1x144xf32>
    %15 = vector.broadcast %14 : vector<1x144xf32> to vector<32x144xf32>
    %16 = arith.addf %13, %15 : vector<32x144xf32>
    %c0_11 = arith.constant 0 : index
    %c0_12 = arith.constant 0 : index
    %c0_13 = arith.constant 0 : index
    %17 = vector.load %arg6[%c0_11, %c0_12, %c0_13] : memref<4x144x32xf32, #tpu.memory_space<vmem>>, vector<1x144x32xf32>
    %18 = vector.shape_cast %17 : vector<1x144x32xf32> to vector<144x32xf32>
    %cst_14 = arith.constant dense<0.000000e+00> : vector<8x32xf32>
    %19 = tpu.matmul %1, %18, %cst_14 {dimension_numbers = #tpu.dot_dimension_numbers<[1], [0], [0], [1], [0, 0, 1, 1], [], []>} : vector<8x144xf32>, vector<144x32xf32>, vector<8x32xf32> -> vector<8x32xf32>
    %c1 = arith.constant 1 : index
    %c0_15 = arith.constant 0 : index
    %c0_16 = arith.constant 0 : index
    %20 = vector.load %arg6[%c1, %c0_15, %c0_16] : memref<4x144x32xf32, #tpu.memory_space<vmem>>, vector<1x144x32xf32>
    %21 = vector.shape_cast %20 : vector<1x144x32xf32> to vector<144x32xf32>
    %cst_17 = arith.constant dense<0.000000e+00> : vector<8x32xf32>
    %22 = tpu.matmul %2, %21, %cst_17 {dimension_numbers = #tpu.dot_dimension_numbers<[1], [0], [0], [1], [0, 0, 1, 1], [], []>} : vector<8x144xf32>, vector<144x32xf32>, vector<8x32xf32> -> vector<8x32xf32>
    %23 = arith.addf %19, %22 : vector<8x32xf32>
    %c2 = arith.constant 2 : index
    %c0_18 = arith.constant 0 : index
    %c0_19 = arith.constant 0 : index
    %24 = vector.load %arg6[%c2, %c0_18, %c0_19] : memref<4x144x32xf32, #tpu.memory_space<vmem>>, vector<1x144x32xf32>
    %25 = vector.shape_cast %24 : vector<1x144x32xf32> to vector<144x32xf32>
    %cst_20 = arith.constant dense<0.000000e+00> : vector<8x32xf32>
    %26 = tpu.matmul %3, %25, %cst_20 {dimension_numbers = #tpu.dot_dimension_numbers<[1], [0], [0], [1], [0, 0, 1, 1], [], []>} : vector<8x144xf32>, vector<144x32xf32>, vector<8x32xf32> -> vector<8x32xf32>
    %27 = arith.addf %23, %26 : vector<8x32xf32>
    %c3 = arith.constant 3 : index
    %c0_21 = arith.constant 0 : index
    %c0_22 = arith.constant 0 : index
    %28 = vector.load %arg6[%c3, %c0_21, %c0_22] : memref<4x144x32xf32, #tpu.memory_space<vmem>>, vector<1x144x32xf32>
    %29 = vector.shape_cast %28 : vector<1x144x32xf32> to vector<144x32xf32>
    %cst_23 = arith.constant dense<0.000000e+00> : vector<8x32xf32>
    %30 = tpu.matmul %4, %29, %cst_23 {dimension_numbers = #tpu.dot_dimension_numbers<[1], [0], [0], [1], [0, 0, 1, 1], [], []>} : vector<8x144xf32>, vector<144x32xf32>, vector<8x32xf32> -> vector<8x32xf32>
    %31 = arith.addf %27, %30 : vector<8x32xf32>
    %c0_24 = arith.constant 0 : index
    %c0_25 = arith.constant 0 : index
    %32 = vector.load %arg7[%c0_24, %c0_25] : memref<1x32xf32, #tpu.memory_space<vmem>>, vector<1x32xf32>
    %33 = vector.broadcast %32 : vector<1x32xf32> to vector<8x32xf32>
    %34 = arith.addf %31, %33 : vector<8x32xf32>
    %cst_26 = arith.constant 0.000000e+00 : f32
    %35 = vector.broadcast %cst_26 : f32 to vector<8x32xf32>
    %36 = arith.maximumf %34, %35 : vector<8x32xf32>
    %c0_27 = arith.constant 0 : index
    %c0_28 = arith.constant 0 : index
    %37 = vector.load %arg8[%c0_27, %c0_28] : memref<32x144xf32, #tpu.memory_space<vmem>>, vector<32x144xf32>
    %cst_29 = arith.constant dense<0.000000e+00> : vector<8x144xf32>
    %38 = tpu.matmul %36, %37, %cst_29 {dimension_numbers = #tpu.dot_dimension_numbers<[1], [0], [0], [1], [0, 0, 1, 1], [], []>} : vector<8x32xf32>, vector<32x144xf32>, vector<8x144xf32> -> vector<8x144xf32>
    %c0_30 = arith.constant 0 : index
    %c0_31 = arith.constant 0 : index
    %39 = vector.load %arg9[%c0_30, %c0_31] : memref<1x144xf32, #tpu.memory_space<vmem>>, vector<1x144xf32>
    %40 = vector.broadcast %39 : vector<1x144xf32> to vector<8x144xf32>
    %41 = arith.addf %38, %40 : vector<8x144xf32>
    %42 = tpu.concatenate %41, %41, %41, %41 in 0 : vector<8x144xf32>, vector<8x144xf32>, vector<8x144xf32>, vector<8x144xf32> -> vector<32x144xf32>
    %43 = arith.mulf %16, %42 : vector<32x144xf32>
    %cst_32 = arith.constant dense<0.000000e+00> : vector<32xf32>
    %44 = vector.multi_reduction <add>, %43, %cst_32 [1] : vector<32x144xf32> to vector<32xf32>
    %45 = vector.shape_cast %44 : vector<32xf32> to vector<32x1xf32>
    %cst_33 = arith.constant 0.0833333358 : f32
    %46 = vector.broadcast %cst_33 : f32 to vector<32x1xf32>
    %47 = arith.mulf %45, %46 : vector<32x1xf32>
    %48 = vector.extract_strided_slice %47 {offsets = [0, 0], sizes = [8, 1], strides = [1, 1]} : vector<32x1xf32> to vector<8x1xf32>
    %49 = vector.extract_strided_slice %47 {offsets = [8, 0], sizes = [8, 1], strides = [1, 1]} : vector<32x1xf32> to vector<8x1xf32>
    %50 = vector.extract_strided_slice %47 {offsets = [16, 0], sizes = [8, 1], strides = [1, 1]} : vector<32x1xf32> to vector<8x1xf32>
    %51 = vector.extract_strided_slice %47 {offsets = [24, 0], sizes = [8, 1], strides = [1, 1]} : vector<32x1xf32> to vector<8x1xf32>
    %52 = arith.maximumf %48, %49 : vector<8x1xf32>
    %53 = arith.maximumf %52, %50 : vector<8x1xf32>
    %54 = arith.maximumf %53, %51 : vector<8x1xf32>
    %55 = arith.subf %48, %54 : vector<8x1xf32>
    %56 = math.exp %55 : vector<8x1xf32>
    %57 = arith.subf %49, %54 : vector<8x1xf32>
    %58 = math.exp %57 : vector<8x1xf32>
    %59 = arith.subf %50, %54 : vector<8x1xf32>
    %60 = math.exp %59 : vector<8x1xf32>
    %61 = arith.subf %51, %54 : vector<8x1xf32>
    %62 = math.exp %61 : vector<8x1xf32>
    %63 = arith.addf %56, %58 : vector<8x1xf32>
    %64 = arith.addf %63, %60 : vector<8x1xf32>
    %65 = arith.addf %64, %62 : vector<8x1xf32>
    %66 = tpu.reciprocal %65 {approx = true} : vector<8x1xf32> -> vector<8x1xf32>
    %67 = arith.mulf %56, %66 : vector<8x1xf32>
    %68 = vector.broadcast %67 : vector<8x1xf32> to vector<8x144xf32>
    %69 = arith.mulf %1, %68 : vector<8x144xf32>
    %70 = arith.mulf %58, %66 : vector<8x1xf32>
    %71 = vector.broadcast %70 : vector<8x1xf32> to vector<8x144xf32>
    %72 = arith.mulf %2, %71 : vector<8x144xf32>
    %73 = arith.addf %69, %72 : vector<8x144xf32>
    %74 = arith.mulf %60, %66 : vector<8x1xf32>
    %75 = vector.broadcast %74 : vector<8x1xf32> to vector<8x144xf32>
    %76 = arith.mulf %3, %75 : vector<8x144xf32>
    %77 = arith.addf %73, %76 : vector<8x144xf32>
    %78 = arith.mulf %62, %66 : vector<8x1xf32>
    %79 = vector.broadcast %78 : vector<8x1xf32> to vector<8x144xf32>
    %80 = arith.mulf %4, %79 : vector<8x144xf32>
    %81 = arith.addf %77, %80 : vector<8x144xf32>
    %cst_34 = arith.constant 2.500000e-01 : f32
    %82 = vector.broadcast %cst_34 : f32 to vector<8x144xf32>
    %83 = arith.mulf %81, %82 : vector<8x144xf32>
    %c0_35 = arith.constant 0 : index
    %c0_36 = arith.constant 0 : index
    %84 = vector.load %arg10[%c0_35, %c0_36] : memref<8x144xf32, #tpu.memory_space<vmem>>, vector<8x144xf32>
    tpu.vector_store %arg10[%c0_35, %c0_36], %83 {strides = array<i32>} : memref<8x144xf32, #tpu.memory_space<vmem>>, vector<8x144xf32>,
    return
  }
  func.func @transform_0(%arg0: i32) -> (i32, i32) {
    %c0_i32 = arith.constant 0 : i32
    %c0_i32_0 = arith.constant 0 : i32
    return %arg0, %c0_i32 : i32, i32
  }
  func.func @transform_1(%arg0: i32) -> (i32, i32) {
    %c0_i32 = arith.constant 0 : i32
    %c0_i32_0 = arith.constant 0 : i32
    %c0_i32_1 = arith.constant 0 : i32
    return %c0_i32, %c0_i32_0 : i32, i32
  }
  func.func @transform_2(%arg0: i32) -> (i32, i32) {
    %c0_i32 = arith.constant 0 : i32
    %c0_i32_0 = arith.constant 0 : i32
    %c0_i32_1 = arith.constant 0 : i32
    return %c0_i32, %c0_i32_0 : i32, i32
  }
  func.func @transform_3(%arg0: i32) -> (i32, i32) {
    %c0_i32 = arith.constant 0 : i32
    %c0_i32_0 = arith.constant 0 : i32
    %c0_i32_1 = arith.constant 0 : i32
    return %c0_i32, %c0_i32_0 : i32, i32
  }
  func.func @transform_4(%arg0: i32) -> (i32, i32) {
    %c0_i32 = arith.constant 0 : i32
    %c0_i32_0 = arith.constant 0 : i32
    %c0_i32_1 = arith.constant 0 : i32
    return %c0_i32, %c0_i32_0 : i32, i32
  }
  func.func @transform_5(%arg0: i32) -> (i32, i32, i32) {
    %c0_i32 = arith.constant 0 : i32
    %c0_i32_0 = arith.constant 0 : i32
    %c0_i32_1 = arith.constant 0 : i32
    %c0_i32_2 = arith.constant 0 : i32
    return %c0_i32, %c0_i32_0, %c0_i32_1 : i32, i32, i32
  }
  func.func @transform_6(%arg0: i32) -> (i32, i32) {
    %c0_i32 = arith.constant 0 : i32
    %c0_i32_0 = arith.constant 0 : i32
    %c0_i32_1 = arith.constant 0 : i32
    return %c0_i32, %c0_i32_0 : i32, i32
  }
  func.func @transform_7(%arg0: i32) -> (i32, i32) {
    %c0_i32 = arith.constant 0 : i32
    %c0_i32_0 = arith.constant 0 : i32
    %c0_i32_1 = arith.constant 0 : i32
    return %c0_i32, %c0_i32_0 : i32, i32
  }
  func.func @transform_8(%arg0: i32) -> (i32, i32) {
    %c0_i32 = arith.constant 0 : i32
    %c0_i32_0 = arith.constant 0 : i32
    %c0_i32_1 = arith.constant 0 : i32
    return %c0_i32, %c0_i32_0 : i32, i32
  }
  func.func @transform_9(%arg0: i32) -> (i32, i32) {
    %c0_i32 = arith.constant 0 : i32
    %c0_i32_0 = arith.constant 0 : i32
    return %arg0, %c0_i32 : i32, i32
  }
}

</mosaic_0001>

<llo_original>
// kernel: ocid_ur_net_forward.1
$region0: #{ocid_ur_net_forward.1}
  #allocation0 [shape = 'u32[]', space=smem, size = 0x4, offset = 0x4, fixed_abs, tag = 'smem constant byte address 0x4 - core index']
  #allocation1 [shape = 'u32[72,128]{1,0:T(1,128)}', space=vmem, size = 0x9000, scoped, tag = 'internal scratch']
  %s0 = inlined_call_operand.vmem [shape: f32[32,144], index: 0, kind: input, shape index: {}]
  %s1 = inlined_call_operand.vmem [shape: f32[144,32], index: 1, kind: input, shape index: {}]
  %s2 = inlined_call_operand.vmem [shape: f32[1,32], index: 2, kind: input, shape index: {}]
  %s3 = inlined_call_operand.vmem [shape: f32[32,144], index: 3, kind: input, shape index: {}]
  %s4 = inlined_call_operand.vmem [shape: f32[1,144], index: 4, kind: input, shape index: {}]
  %s5 = inlined_call_operand.vmem [shape: f32[4,144,32], index: 5, kind: input, shape index: {}]
  %s6 = inlined_call_operand.vmem [shape: f32[1,32], index: 6, kind: input, shape index: {}]
  %s7 = inlined_call_operand.vmem [shape: f32[32,144], index: 7, kind: input, shape index: {}]
  %s8 = inlined_call_operand.vmem [shape: f32[1,144], index: 8, kind: input, shape index: {}]
  %s9 = inlined_call_operand.vmem [shape: f32[8,144], index: 9, kind: output, shape index: {}]
  %s10 = sld [smem:[#allocation0]]
  $region46: #{ocid_ur_net_forward.1} parent=0
    _
  %s12 = ssub.s32 1, %s10
  %s13 = scalar_select 0, %s12, %s10
  // Predicated region
  $region2: #{ocid_ur_net_forward.1} parent=0 // pred_check
    _
  $region3: #{ocid_ur_net_forward.1} parent=0 // pred_check_branch
    %15 = sbr.rel (0) target = $region5
  $region4: #{ocid_ur_net_forward.1} parent=0 // pred_region
    _
  $region5: #{ocid_ur_net_forward.1} parent=0 // pred_fallthru
    _
  // Predicated region
  $region6: #{ocid_ur_net_forward.1} parent=0 // pred_check
    _
  $region7: #{ocid_ur_net_forward.1} parent=0 // pred_check_branch
    %17 = sbr.rel (0) target = $region9
  $region8: #{ocid_ur_net_forward.1} parent=0 // pred_region
    _
  $region9: #{ocid_ur_net_forward.1} parent=0 // pred_fallthru
    _
  // Predicated region
  $region10: #{ocid_ur_net_forward.1} parent=0 // pred_check
    _
  $region11: #{ocid_ur_net_forward.1} parent=0 // pred_check_branch
    %19 = sbr.rel (0) target = $region13
  $region12: #{ocid_ur_net_forward.1} parent=0 // pred_region
    _
  $region13: #{ocid_ur_net_forward.1} parent=0 // pred_fallthru
    _
  // Predicated region
  $region14: #{ocid_ur_net_forward.1} parent=0 // pred_check
    _
  $region15: #{ocid_ur_net_forward.1} parent=0 // pred_check_branch
    %21 = sbr.rel (0) target = $region17
  $region16: #{ocid_ur_net_forward.1} parent=0 // pred_region
    _
  $region17: #{ocid_ur_net_forward.1} parent=0 // pred_fallthru
    _
  // Predicated region
  $region18: #{ocid_ur_net_forward.1} parent=0 // pred_check
    _
  $region19: #{ocid_ur_net_forward.1} parent=0 // pred_check_branch
    %23 = sbr.rel (0) target = $region21
  $region20: #{ocid_ur_net_forward.1} parent=0 // pred_region
    _
  $region21: #{ocid_ur_net_forward.1} parent=0 // pred_fallthru
    _
  // Predicated region
  $region22: #{ocid_ur_net_forward.1} parent=0 // pred_check
    _
  $region23: #{ocid_ur_net_forward.1} parent=0 // pred_check_branch
    %25 = sbr.rel (0) target = $region25
  $region24: #{ocid_ur_net_forward.1} parent=0 // pred_region
    _
  $region25: #{ocid_ur_net_forward.1} parent=0 // pred_fallthru
    _
  // Predicated region
  $region26: #{ocid_ur_net_forward.1} parent=0 // pred_check
    _
  $region27: #{ocid_ur_net_forward.1} parent=0 // pred_check_branch
    %27 = sbr.rel (0) target = $region29
  $region28: #{ocid_ur_net_forward.1} parent=0 // pred_region
    _
  $region29: #{ocid_ur_net_forward.1} parent=0 // pred_fallthru
    _
  // Predicated region
  $region30: #{ocid_ur_net_forward.1} parent=0 // pred_check
    _
  $region31: #{ocid_ur_net_forward.1} parent=0 // pred_check_branch
    %29 = sbr.rel (0) target = $region33
  $region32: #{ocid_ur_net_forward.1} parent=0 // pred_region
    _
  $region33: #{ocid_ur_net_forward.1} parent=0 // pred_fallthru
    _
  // Predicated region
  $region34: #{ocid_ur_net_forward.1} parent=0 // pred_check
    _
  $region35: #{ocid_ur_net_forward.1} parent=0 // pred_check_branch
    %31 = sbr.rel (0) target = $region37
  $region36: #{ocid_ur_net_forward.1} parent=0 // pred_region
    _
  $region37: #{ocid_ur_net_forward.1} parent=0 // pred_fallthru
    _
  %v32 = vld [vmem:[%s0] sm:$0xff]
  %v33 = vld [vmem:[%s0 + $0x8] sm:$0xff]
  %v34 = vld [vmem:[%s0 + $0x10] sm:$0xff]
  %v35 = vld [vmem:[%s0 + $0x18] sm:$0xff]
  %v36 = vld [vmem:[%s0 + $0x20] sm:$0xff]
  %v37 = vld [vmem:[%s0 + $0x28] sm:$0xff]
  %v38 = vld [vmem:[%s0 + $0x30] sm:$0xff]
  %v39 = vld [vmem:[%s0 + $0x38] sm:$0xff]
  %v40 = vld [vmem:[%s1] sm:$0xff]
  %v41 = vld [vmem:[%s1 + $0x8] sm:$0xff]
  %v42 = vld [vmem:[%s1 + $0x10] sm:$0xff]
  %v43 = vld [vmem:[%s1 + $0x18] sm:$0xff]
  %v44 = vld [vmem:[%s1 + $0x20] sm:$0xff]
  %v45 = vld [vmem:[%s1 + $0x28] sm:$0xff]
  %v46 = vld [vmem:[%s1 + $0x30] sm:$0xff]
  %v47 = vld [vmem:[%s1 + $0x38] sm:$0xff]
  %v48 = vld [vmem:[%s1 + $0x40] sm:$0xff]
  %v49 = vld [vmem:[%s1 + $0x48] sm:$0xff]
  %v50 = vld [vmem:[%s1 + $0x50] sm:$0xff]
  %v51 = vld [vmem:[%s1 + $0x58] sm:$0xff]
  %v52 = vld [vmem:[%s1 + $0x60] sm:$0xff]
  %v53 = vld [vmem:[%s1 + $0x68] sm:$0xff]
  %v54 = vld [vmem:[%s1 + $0x70] sm:$0xff]
  %v55 = vld [vmem:[%s1 + $0x78] sm:$0xff]
  %v56 = vld [vmem:[%s1 + $0x80] sm:$0xff]
  %v57 = vld [vmem:[%s1 + $0x88] sm:$0xff]
  %v58 = vld [vmem:[%s2] sm:$0x1]
  %v60 = vperm.slane %v58, 0
  %vm62 = vcmask 130048
  %v64 = vsel %vm62, %v33, 0
  %v67 = vsel %vm62, %v35, 0
  %v70 = vsel %vm62, %v37, 0
  %v73 = vsel %vm62, %v39, 0
  %75 = vmatpush.msra.mxu0 %v55
  %76 = vmatpush.msra.mxu0 %v54
  %77 = vmatpush.msra.mxu0 %v53
  %78 = vmatpush.msra.mxu0 %v52
  %79 = vmatpush.msra.mxu0 %v51
  %80 = vmatpush.msra.mxu0 %v50
  %81 = vmatpush.msra.mxu0 %v49
  %82 = vmatpush.msra.mxu0 %v48
  %83 = vmatpush.msra.mxu0 %v47
  %84 = vmatpush.msra.mxu0 %v46
  %85 = vmatpush.msra.mxu0 %v45
  %86 = vmatpush.msra.mxu0 %v44
  %87 = vmatpush.msra.mxu0 %v43
  %88 = vmatpush.msra.mxu0 %v42
  %89 = vmatpush.msra.mxu0 %v41
  %90 = vmatpush.msra.mxu0 %v40
  %91 = vmatmul.f32.gmra.mxu0 %v32
  %v92 = vpop.f32.mrf.mxu0
  %v93 = vadd.f32 %v60, %v92
  %94 = vmatmul.f32.gmra.mxu0 %v34
  %v95 = vpop.f32.mrf.mxu0
  %v96 = vadd.f32 %v60, %v95
  %97 = vmatmul.f32.gmra.mxu0 %v36
  %v98 = vpop.f32.mrf.mxu0
  %v99 = vadd.f32 %v60, %v98
  %100 = vmatmul.f32.gmra.mxu0 %v38
  %v101 = vpop.f32.mrf.mxu0
  %v102 = vadd.f32 %v60, %v101
  %103 = vdwg.mxu0
  %104 = vmatpush.msra.mxu0 0.0
  %105 = vmatpush.msra.mxu0 0.0
  %106 = vmatpush.msra.mxu0 0.0
  %107 = vmatpush.msra.mxu0 0.0
  %108 = vmatpush.msra.mxu0 0.0
  %109 = vmatpush.msra.mxu0 0.0
  %110 = vmatpush.msra.mxu0 0.0
  %111 = vmatpush.msra.mxu0 0.0
  %112 = vmatpush.msra.mxu0 0.0
  %113 = vmatpush.msra.mxu0 0.0
  %114 = vmatpush.msra.mxu0 0.0
  %115 = vmatpush.msra.mxu0 0.0
  %116 = vmatpush.msra.mxu0 0.0
  %117 = vmatpush.msra.mxu0 0.0
  %118 = vmatpush.msra.mxu0 %v57
  %119 = vmatpush.msra.mxu0 %v56
  %120 = vmatmul.f32.gmra.mxu0 %v64
  %v121 = vpop.f32.mrf.mxu0
  %v122 = vadd.f32 %v93, %v121
  %123 = vmatmul.f32.gmra.mxu0 %v67
  %v124 = vpop.f32.mrf.mxu0
  %v125 = vadd.f32 %v96, %v124
  %126 = vmatmul.f32.gmra.mxu0 %v70
  %v127 = vpop.f32.mrf.mxu0
  %v128 = vadd.f32 %v99, %v127
  %129 = vmatmul.f32.gmra.mxu0 %v73
  %v130 = vpop.f32.mrf.mxu0
  %v131 = vadd.f32 %v102, %v130
  %132 = vdwg.mxu0
  %v133 = vmax.f32 %v122, 0.0
  %v134 = vmax.f32 %v125, 0.0
  %v135 = vmax.f32 %v128, 0.0
  %v136 = vmax.f32 %v131, 0.0
  %v137 = vld [vmem:[%s3] sm:$0xff]
  %v138 = vld [vmem:[%s3 + $0x8] sm:$0xff]
  %v139 = vld [vmem:[%s3 + $0x10] sm:$0xff]
  %v140 = vld [vmem:[%s3 + $0x18] sm:$0xff]
  %v141 = vld [vmem:[%s3 + $0x20] sm:$0xff]
  %v142 = vld [vmem:[%s3 + $0x28] sm:$0xff]
  %v143 = vld [vmem:[%s3 + $0x30] sm:$0xff]
  %v144 = vld [vmem:[%s3 + $0x38] sm:$0xff]
  %v145 = vld [vmem:[%s4] sm:$0x3]
  %v147 = vperm.slane %v145, 0
  %v148 = vperm.slane %v145, 1
  %vm151 = vcmask 261120
  %v153 = vsel %vm151, %v133, 0
  %v156 = vsel %vm151, %v134, 0
  %v159 = vsel %vm151, %v135, 0
  %v162 = vsel %vm151, %v136, 0
  %164 = vmatpush.msra.mxu0 0.0
  %165 = vmatpush.msra.mxu0 0.0
  %166 = vmatpush.msra.mxu0 0.0
  %167 = vmatpush.msra.mxu0 0.0
  %168 = vmatpush.msra.mxu0 0.0
  %169 = vmatpush.msra.mxu0 0.0
  %170 = vmatpush.msra.mxu0 0.0
  %171 = vmatpush.msra.mxu0 0.0
  %172 = vmatpush.msra.mxu0 0.0
  %173 = vmatpush.msra.mxu0 0.0
  %174 = vmatpush.msra.mxu0 0.0
  %175 = vmatpush.msra.mxu0 0.0
  %176 = vmatpush.msra.mxu0 %v143
  %177 = vmatpush.msra.mxu0 %v141
  %178 = vmatpush.msra.mxu0 %v139
  %179 = vmatpush.msra.mxu0 %v137
  %180 = vmatmul.f32.gmra.mxu0 %v153
  %v181 = vpop.f32.mrf.mxu0
  %v182 = vadd.f32 %v147, %v181
  %183 = vmatmul.f32.gmra.mxu0 %v156
  %v184 = vpop.f32.mrf.mxu0
  %v185 = vadd.f32 %v147, %v184
  %186 = vmatmul.f32.gmra.mxu0 %v159
  %v187 = vpop.f32.mrf.mxu0
  %v188 = vadd.f32 %v147, %v187
  %189 = vmatmul.f32.gmra.mxu0 %v162
  %v190 = vpop.f32.mrf.mxu0
  %v191 = vadd.f32 %v147, %v190
  %192 = vdwg.mxu0
  %193 = vmatpush.msra.mxu0 0.0
  %194 = vmatpush.msra.mxu0 0.0
  %195 = vmatpush.msra.mxu0 0.0
  %196 = vmatpush.msra.mxu0 0.0
  %197 = vmatpush.msra.mxu0 0.0
  %198 = vmatpush.msra.mxu0 0.0
  %199 = vmatpush.msra.mxu0 0.0
  %200 = vmatpush.msra.mxu0 0.0
  %201 = vmatpush.msra.mxu0 0.0
  %202 = vmatpush.msra.mxu0 0.0
  %203 = vmatpush.msra.mxu0 0.0
  %204 = vmatpush.msra.mxu0 0.0
  %205 = vmatpush.msra.mxu0 %v144
  %206 = vmatpush.msra.mxu0 %v142
  %207 = vmatpush.msra.mxu0 %v140
  %208 = vmatpush.msra.mxu0 %v138
  %209 = vmatmul.f32.gmra.mxu0 %v153
  %v210 = vpop.f32.mrf.mxu0
  %v211 = vadd.f32 %v148, %v210
  %212 = vmatmul.f32.gmra.mxu0 %v156
  %v213 = vpop.f32.mrf.mxu0
  %v214 = vadd.f32 %v148, %v213
  %215 = vmatmul.f32.gmra.mxu0 %v159
  %v216 = vpop.f32.mrf.mxu0
  %v217 = vadd.f32 %v148, %v216
  %218 = vmatmul.f32.gmra.mxu0 %v162
  %v219 = vpop.f32.mrf.mxu0
  %v220 = vadd.f32 %v148, %v219
  %221 = vdwg.mxu0
  %v222 = vld [vmem:[%s5] sm:$0xff]
  %v223 = vld [vmem:[%s5 + $0x8] sm:$0xff]
  %v224 = vld [vmem:[%s5 + $0x10] sm:$0xff]
  %v225 = vld [vmem:[%s5 + $0x18] sm:$0xff]
  %v226 = vld [vmem:[%s5 + $0x20] sm:$0xff]
  %v227 = vld [vmem:[%s5 + $0x28] sm:$0xff]
  %v228 = vld [vmem:[%s5 + $0x30] sm:$0xff]
  %v229 = vld [vmem:[%s5 + $0x38] sm:$0xff]
  %v230 = vld [vmem:[%s5 + $0x40] sm:$0xff]
  %v231 = vld [vmem:[%s5 + $0x48] sm:$0xff]
  %v232 = vld [vmem:[%s5 + $0x50] sm:$0xff]
  %v233 = vld [vmem:[%s5 + $0x58] sm:$0xff]
  %v234 = vld [vmem:[%s5 + $0x60] sm:$0xff]
  %v235 = vld [vmem:[%s5 + $0x68] sm:$0xff]
  %v236 = vld [vmem:[%s5 + $0x70] sm:$0xff]
  %v237 = vld [vmem:[%s5 + $0x78] sm:$0xff]
  %v238 = vld [vmem:[%s5 + $0x80] sm:$0xff]
  %v239 = vld [vmem:[%s5 + $0x88] sm:$0xff]
  %s240 = scalar_lea.vmem %s5, 144
  %v241 = vld [vmem:[%s240] sm:$0xff]
  %v242 = vld [vmem:[%s240 + $0x8] sm:$0xff]
  %v243 = vld [vmem:[%s240 + $0x10] sm:$0xff]
  %v244 = vld [vmem:[%s240 + $0x18] sm:$0xff]
  %v245 = vld [vmem:[%s240 + $0x20] sm:$0xff]
  %v246 = vld [vmem:[%s240 + $0x28] sm:$0xff]
  %v247 = vld [vmem:[%s240 + $0x30] sm:$0xff]
  %v248 = vld [vmem:[%s240 + $0x38] sm:$0xff]
  %v249 = vld [vmem:[%s240 + $0x40] sm:$0xff]
  %v250 = vld [vmem:[%s240 + $0x48] sm:$0xff]
  %v251 = vld [vmem:[%s240 + $0x50] sm:$0xff]
  %v252 = vld [vmem:[%s240 + $0x58] sm:$0xff]
  %v253 = vld [vmem:[%s240 + $0x60] sm:$0xff]
  %v254 = vld [vmem:[%s240 + $0x68] sm:$0xff]
  %v255 = vld [vmem:[%s240 + $0x70] sm:$0xff]
  %v256 = vld [vmem:[%s240 + $0x78] sm:$0xff]
  %v257 = vld [vmem:[%s240 + $0x80] sm:$0xff]
  %v258 = vld [vmem:[%s240 + $0x88] sm:$0xff]
  %259 = vmatpush.msra.mxu0 %v256
  %260 = vmatpush.msra.mxu0 %v255
  %261 = vmatpush.msra.mxu0 %v254
  %262 = vmatpush.msra.mxu0 %v253
  %263 = vmatpush.msra.mxu0 %v252
  %264 = vmatpush.msra.mxu0 %v251
  %265 = vmatpush.msra.mxu0 %v250
  %266 = vmatpush.msra.mxu0 %v249
  %267 = vmatpush.msra.mxu0 %v248
  %268 = vmatpush.msra.mxu0 %v247
  %269 = vmatpush.msra.mxu0 %v246
  %270 = vmatpush.msra.mxu0 %v245
  %271 = vmatpush.msra.mxu0 %v244
  %272 = vmatpush.msra.mxu0 %v243
  %273 = vmatpush.msra.mxu0 %v242
  %274 = vmatpush.msra.mxu0 %v241
  %275 = vmatmul.f32.gmra.mxu0 %v34
  %v276 = vpop.f32.mrf.mxu0
  %v277 = vadd.f32 0.0, %v276
  %278 = vdwg.mxu0
  %279 = vmatpush.msra.mxu0 0.0
  %280 = vmatpush.msra.mxu0 0.0
  %281 = vmatpush.msra.mxu0 0.0
  %282 = vmatpush.msra.mxu0 0.0
  %283 = vmatpush.msra.mxu0 0.0
  %284 = vmatpush.msra.mxu0 0.0
  %285 = vmatpush.msra.mxu0 0.0
  %286 = vmatpush.msra.mxu0 0.0
  %287 = vmatpush.msra.mxu0 0.0
  %288 = vmatpush.msra.mxu0 0.0
  %289 = vmatpush.msra.mxu0 0.0
  %290 = vmatpush.msra.mxu0 0.0
  %291 = vmatpush.msra.mxu0 0.0
  %292 = vmatpush.msra.mxu0 0.0
  %293 = vmatpush.msra.mxu0 %v258
  %294 = vmatpush.msra.mxu0 %v257
  %295 = vmatmul.f32.gmra.mxu0 %v67
  %v296 = vpop.f32.mrf.mxu0
  %v297 = vadd.f32 %v277, %v296
  %298 = vdwg.mxu0
  %299 = vmatpush.msra.mxu0 %v237
  %300 = vmatpush.msra.mxu0 %v236
  %301 = vmatpush.msra.mxu0 %v235
  %302 = vmatpush.msra.mxu0 %v234
  %303 = vmatpush.msra.mxu0 %v233
  %304 = vmatpush.msra.mxu0 %v232
  %305 = vmatpush.msra.mxu0 %v231
  %306 = vmatpush.msra.mxu0 %v230
  %307 = vmatpush.msra.mxu0 %v229
  %308 = vmatpush.msra.mxu0 %v228
  %309 = vmatpush.msra.mxu0 %v227
  %310 = vmatpush.msra.mxu0 %v226
  %311 = vmatpush.msra.mxu0 %v225
  %312 = vmatpush.msra.mxu0 %v224
  %313 = vmatpush.msra.mxu0 %v223
  %314 = vmatpush.msra.mxu0 %v222
  %315 = vmatmul.f32.gmra.mxu0 %v32
  %v316 = vpop.f32.mrf.mxu0
  %v317 = vadd.f32 %v297, %v316
  %318 = vdwg.mxu0
  %319 = vmatpush.msra.mxu0 0.0
  %320 = vmatpush.msra.mxu0 0.0
  %321 = vmatpush.msra.mxu0 0.0
  %322 = vmatpush.msra.mxu0 0.0
  %323 = vmatpush.msra.mxu0 0.0
  %324 = vmatpush.msra.mxu0 0.0
  %325 = vmatpush.msra.mxu0 0.0
  %326 = vmatpush.msra.mxu0 0.0
  %327 = vmatpush.msra.mxu0 0.0
  %328 = vmatpush.msra.mxu0 0.0
  %329 = vmatpush.msra.mxu0 0.0
  %330 = vmatpush.msra.mxu0 0.0
  %331 = vmatpush.msra.mxu0 0.0
  %332 = vmatpush.msra.mxu0 0.0
  %333 = vmatpush.msra.mxu0 %v239
  %334 = vmatpush.msra.mxu0 %v238
  %335 = vmatmul.f32.gmra.mxu0 %v64
  %v336 = vpop.f32.mrf.mxu0
  %v337 = vadd.f32 %v317, %v336
  %338 = vdwg.mxu0
  %s339 = scalar_lea.vmem %s5, 288
  %v340 = vld [vmem:[%s339] sm:$0xff]
  %v341 = vld [vmem:[%s339 + $0x8] sm:$0xff]
  %v342 = vld [vmem:[%s339 + $0x10] sm:$0xff]
  %v343 = vld [vmem:[%s339 + $0x18] sm:$0xff]
  %v344 = vld [vmem:[%s339 + $0x20] sm:$0xff]
  %v345 = vld [vmem:[%s339 + $0x28] sm:$0xff]
  %v346 = vld [vmem:[%s339 + $0x30] sm:$0xff]
  %v347 = vld [vmem:[%s339 + $0x38] sm:$0xff]
  %v348 = vld [vmem:[%s339 + $0x40] sm:$0xff]
  %v349 = vld [vmem:[%s339 + $0x48] sm:$0xff]
  %v350 = vld [vmem:[%s339 + $0x50] sm:$0xff]
  %v351 = vld [vmem:[%s339 + $0x58] sm:$0xff]
  %v352 = vld [vmem:[%s339 + $0x60] sm:$0xff]
  %v353 = vld [vmem:[%s339 + $0x68] sm:$0xff]
  %v354 = vld [vmem:[%s339 + $0x70] sm:$0xff]
  %v355 = vld [vmem:[%s339 + $0x78] sm:$0xff]
  %v356 = vld [vmem:[%s339 + $0x80] sm:$0xff]
  %v357 = vld [vmem:[%s339 + $0x88] sm:$0xff]
  %358 = vmatpush.msra.mxu0 %v355
  %359 = vmatpush.msra.mxu0 %v354
  %360 = vmatpush.msra.mxu0 %v353
  %361 = vmatpush.msra.mxu0 %v352
  %362 = vmatpush.msra.mxu0 %v351
  %363 = vmatpush.msra.mxu0 %v350
  %364 = vmatpush.msra.mxu0 %v349
  %365 = vmatpush.msra.mxu0 %v348
  %366 = vmatpush.msra.mxu0 %v347
  %367 = vmatpush.msra.mxu0 %v346
  %368 = vmatpush.msra.mxu0 %v345
  %369 = vmatpush.msra.mxu0 %v344
  %370 = vmatpush.msra.mxu0 %v343
  %371 = vmatpush.msra.mxu0 %v342
  %372 = vmatpush.msra.mxu0 %v341
  %373 = vmatpush.msra.mxu0 %v340
  %374 = vmatmul.f32.gmra.mxu0 %v36
  %v375 = vpop.f32.mrf.mxu0
  %v376 = vadd.f32 0.0, %v375
  %377 = vdwg.mxu0
  %378 = vmatpush.msra.mxu0 0.0
  %379 = vmatpush.msra.mxu0 0.0
  %380 = vmatpush.msra.mxu0 0.0
  %381 = vmatpush.msra.mxu0 0.0
  %382 = vmatpush.msra.mxu0 0.0
  %383 = vmatpush.msra.mxu0 0.0
  %384 = vmatpush.msra.mxu0 0.0
  %385 = vmatpush.msra.mxu0 0.0
  %386 = vmatpush.msra.mxu0 0.0
  %387 = vmatpush.msra.mxu0 0.0
  %388 = vmatpush.msra.mxu0 0.0
  %389 = vmatpush.msra.mxu0 0.0
  %390 = vmatpush.msra.mxu0 0.0
  %391 = vmatpush.msra.mxu0 0.0
  %392 = vmatpush.msra.mxu0 %v357
  %393 = vmatpush.msra.mxu0 %v356
  %394 = vmatmul.f32.gmra.mxu0 %v70
  %v395 = vpop.f32.mrf.mxu0
  %v396 = vadd.f32 %v376, %v395
  %397 = vdwg.mxu0
  %v398 = vadd.f32 %v337, %v396
  %s399 = scalar_lea.vmem %s5, 432
  %v400 = vld [vmem:[%s399] sm:$0xff]
  %v401 = vld [vmem:[%s399 + $0x8] sm:$0xff]
  %v402 = vld [vmem:[%s399 + $0x10] sm:$0xff]
  %v403 = vld [vmem:[%s399 + $0x18] sm:$0xff]
  %v404 = vld [vmem:[%s399 + $0x20] sm:$0xff]
  %v405 = vld [vmem:[%s399 + $0x28] sm:$0xff]
  %v406 = vld [vmem:[%s399 + $0x30] sm:$0xff]
  %v407 = vld [vmem:[%s399 + $0x38] sm:$0xff]
  %v408 = vld [vmem:[%s399 + $0x40] sm:$0xff]
  %v409 = vld [vmem:[%s399 + $0x48] sm:$0xff]
  %v410 = vld [vmem:[%s399 + $0x50] sm:$0xff]
  %v411 = vld [vmem:[%s399 + $0x58] sm:$0xff]
  %v412 = vld [vmem:[%s399 + $0x60] sm:$0xff]
  %v413 = vld [vmem:[%s399 + $0x68] sm:$0xff]
  %v414 = vld [vmem:[%s399 + $0x70] sm:$0xff]
  %v415 = vld [vmem:[%s399 + $0x78] sm:$0xff]
  %v416 = vld [vmem:[%s399 + $0x80] sm:$0xff]
  %v417 = vld [vmem:[%s399 + $0x88] sm:$0xff]
  %418 = vmatpush.msra.mxu0 %v415
  %419 = vmatpush.msra.mxu0 %v414
  %420 = vmatpush.msra.mxu0 %v413
  %421 = vmatpush.msra.mxu0 %v412
  %422 = vmatpush.msra.mxu0 %v411
  %423 = vmatpush.msra.mxu0 %v410
  %424 = vmatpush.msra.mxu0 %v409
  %425 = vmatpush.msra.mxu0 %v408
  %426 = vmatpush.msra.mxu0 %v407
  %427 = vmatpush.msra.mxu0 %v406
  %428 = vmatpush.msra.mxu0 %v405
  %429 = vmatpush.msra.mxu0 %v404
  %430 = vmatpush.msra.mxu0 %v403
  %431 = vmatpush.msra.mxu0 %v402
  %432 = vmatpush.msra.mxu0 %v401
  %433 = vmatpush.msra.mxu0 %v400
  %434 = vmatmul.f32.gmra.mxu0 %v38
  %v435 = vpop.f32.mrf.mxu0
  %v436 = vadd.f32 0.0, %v435
  %437 = vdwg.mxu0
  %438 = vmatpush.msra.mxu0 0.0
  %439 = vmatpush.msra.mxu0 0.0
  %440 = vmatpush.msra.mxu0 0.0
  %441 = vmatpush.msra.mxu0 0.0
  %442 = vmatpush.msra.mxu0 0.0
  %443 = vmatpush.msra.mxu0 0.0
  %444 = vmatpush.msra.mxu0 0.0
  %445 = vmatpush.msra.mxu0 0.0
  %446 = vmatpush.msra.mxu0 0.0
  %447 = vmatpush.msra.mxu0 0.0
  %448 = vmatpush.msra.mxu0 0.0
  %449 = vmatpush.msra.mxu0 0.0
  %450 = vmatpush.msra.mxu0 0.0
  %451 = vmatpush.msra.mxu0 0.0
  %452 = vmatpush.msra.mxu0 %v417
  %453 = vmatpush.msra.mxu0 %v416
  %454 = vmatmul.f32.gmra.mxu0 %v73
  %v455 = vpop.f32.mrf.mxu0
  %v456 = vadd.f32 %v436, %v455
  %457 = vdwg.mxu0
  %v458 = vadd.f32 %v398, %v456
  %v459 = vld [vmem:[%s6] sm:$0x1]
  %v461 = vperm.slane %v459, 0
  %v463 = vadd.f32 %v458, %v461
  %v464 = vmax.f32 %v463, 0.0
  %v465 = vld [vmem:[%s7] sm:$0xff]
  %v466 = vld [vmem:[%s7 + $0x8] sm:$0xff]
  %v467 = vld [vmem:[%s7 + $0x10] sm:$0xff]
  %v468 = vld [vmem:[%s7 + $0x18] sm:$0xff]
  %v469 = vld [vmem:[%s7 + $0x20] sm:$0xff]
  %v470 = vld [vmem:[%s7 + $0x28] sm:$0xff]
  %v471 = vld [vmem:[%s7 + $0x30] sm:$0xff]
  %v472 = vld [vmem:[%s7 + $0x38] sm:$0xff]
  %v473 = vld [vmem:[%s8] sm:$0x3]
  %v475 = vperm.slane %v473, 0
  %v476 = vperm.slane %v473, 1
  %v480 = vsel %vm151, %v464, 0
  %482 = vmatpush.msra.mxu0 0.0
  %483 = vmatpush.msra.mxu0 0.0
  %484 = vmatpush.msra.mxu0 0.0
  %485 = vmatpush.msra.mxu0 0.0
  %486 = vmatpush.msra.mxu0 0.0
  %487 = vmatpush.msra.mxu0 0.0
  %488 = vmatpush.msra.mxu0 0.0
  %489 = vmatpush.msra.mxu0 0.0
  %490 = vmatpush.msra.mxu0 0.0
  %491 = vmatpush.msra.mxu0 0.0
  %492 = vmatpush.msra.mxu0 0.0
  %493 = vmatpush.msra.mxu0 0.0
  %494 = vmatpush.msra.mxu0 %v471
  %495 = vmatpush.msra.mxu0 %v469
  %496 = vmatpush.msra.mxu0 %v467
  %497 = vmatpush.msra.mxu0 %v465
  %498 = vmatmul.f32.gmra.mxu0 %v480
  %v499 = vpop.f32.mrf.mxu0
  %v500 = vadd.f32 %v475, %v499
  %501 = vdwg.mxu0
  %502 = vmatpush.msra.mxu0 0.0
  %503 = vmatpush.msra.mxu0 0.0
  %504 = vmatpush.msra.mxu0 0.0
  %505 = vmatpush.msra.mxu0 0.0
  %506 = vmatpush.msra.mxu0 0.0
  %507 = vmatpush.msra.mxu0 0.0
  %508 = vmatpush.msra.mxu0 0.0
  %509 = vmatpush.msra.mxu0 0.0
  %510 = vmatpush.msra.mxu0 0.0
  %511 = vmatpush.msra.mxu0 0.0
  %512 = vmatpush.msra.mxu0 0.0
  %513 = vmatpush.msra.mxu0 0.0
  %514 = vmatpush.msra.mxu0 %v472
  %515 = vmatpush.msra.mxu0 %v470
  %516 = vmatpush.msra.mxu0 %v468
  %517 = vmatpush.msra.mxu0 %v466
  %518 = vmatmul.f32.gmra.mxu0 %v480
  %v519 = vpop.f32.mrf.mxu0
  %v520 = vadd.f32 %v476, %v519
  %521 = vdwg.mxu0
  %v522 = vmul.f32 %v182, %v500
  %v523 = vmul.f32 %v211, %v520
  %v524 = vmul.f32 %v185, %v500
  %v525 = vmul.f32 %v214, %v520
  %v526 = vmul.f32 %v188, %v500
  %v527 = vmul.f32 %v217, %v520
  %v528 = vmul.f32 %v191, %v500
  %v529 = vmul.f32 %v220, %v520
  %v530 = vsel %vm62, %v523, 0.0
  %v531 = vadd.f32 %v522, %v530
  %532 = vadd.xlane.f32.xlu0 %v531
  %v533 = vpop.xlane.xlu0 %532
  %v534 = vsel %vm62, %v525, 0.0
  %v535 = vadd.f32 %v524, %v534
  %536 = vadd.xlane.f32.xlu0 %v535
  %v537 = vpop.xlane.xlu0 %536
  %v538 = vsel %vm62, %v527, 0.0
  %v539 = vadd.f32 %v526, %v538
  %540 = vadd.xlane.f32.xlu0 %v539
  %v541 = vpop.xlane.xlu0 %540
  %v542 = vsel %vm62, %v529, 0.0
  %v543 = vadd.f32 %v528, %v542
  %544 = vadd.xlane.f32.xlu0 %v543
  %v545 = vpop.xlane.xlu0 %544
  %v546 = vmul.f32 %v533, 0.083333336
  %v547 = vmul.f32 %v537, 0.083333336
  %v548 = vmul.f32 %v541, 0.083333336
  %v549 = vmul.f32 %v545, 0.083333336
  %v550 = vmax.f32 %v546, %v547
  %v551 = vmax.f32 %v550, %v548
  %v552 = vmax.f32 %v551, %v549
  %v553 = vsub.f32 %v546, %v552
  %v554 = vmul.f32 %v553, 1.442695
  %v555 = vpow.pop %v554
  %v556 = vsub.f32 %v547, %v552
  %v557 = vmul.f32 %v556, 1.442695
  %v558 = vpow.pop %v557
  %v559 = vsub.f32 %v548, %v552
  %v560 = vmul.f32 %v559, 1.442695
  %v561 = vpow.pop %v560
  %v562 = vsub.f32 %v549, %v552
  %v563 = vmul.f32 %v562, 1.442695
  %v564 = vpow.pop %v563
  %v565 = vadd.f32 %v555, %v558
  %v566 = vadd.f32 %v565, %v561
  %v567 = vadd.f32 %v566, %v564
  %v568 = vrcp.pop %v567
  %v569 = vmul.f32 %v555, %v568
  %v570 = vmul.f32 %v32, %v569
  %v571 = vmul.f32 %v33, %v569
  %v572 = vmul.f32 %v558, %v568
  %v573 = vmul.f32 %v34, %v572
  %v574 = vmul.f32 %v35, %v572
  %v575 = vadd.f32 %v570, %v573
  %v576 = vadd.f32 %v571, %v574
  %v577 = vmul.f32 %v561, %v568
  %v578 = vmul.f32 %v36, %v577
  %v579 = vmul.f32 %v37, %v577
  %v580 = vadd.f32 %v575, %v578
  %v581 = vadd.f32 %v576, %v579
  %v582 = vmul.f32 %v564, %v568
  %v583 = vmul.f32 %v38, %v582
  %v584 = vmul.f32 %v39, %v582
  %v585 = vadd.f32 %v580, %v583
  %v586 = vadd.f32 %v581, %v584
  %v587 = vmul.f32 %v585, 0.25
  %v588 = vmul.f32 %v586, 0.25
  %589 = vst [vmem:[%s9] sm:$0xff] %v587
  %590 = vst.msk [vmem:[%s9 + $0x8] sm:$0xff] %vm62, %v588
  // Predicated region
  $region38: #{ocid_ur_net_forward.1} parent=0 // pred_check
    _
  $region39: #{ocid_ur_net_forward.1} parent=0 // pred_check_branch
    %592 = sbr.rel (0) target = $region41
  $region40: #{ocid_ur_net_forward.1} parent=0 // pred_region
    _
  $region41: #{ocid_ur_net_forward.1} parent=0 // pred_fallthru
    _
  // Predicated region
  $region42: #{ocid_ur_net_forward.1} parent=0 // pred_check
    _
  $region43: #{ocid_ur_net_forward.1} parent=0 // pred_check_branch
    %594 = sbr.rel (0) target = $region45
  $region44: #{ocid_ur_net_forward.1} parent=0 // pred_region
    _
  $region45: #{ocid_ur_net_forward.1} parent=0 // pred_fallthru
    _

</llo_original>
